<compile_context>
chip_gen: v5e
topology: v5e:2x2
jax: 0.10.0
libtpu: 0.0.40
codegen_flags: <defaults>
</compile_context>

<pallas_src>
import jax
import jax.numpy as jnp
from jax.experimental import pallas as pl
from jax.experimental.pallas import tpu as pltpu

IN_FEATURES = 784
HIDDEN = 128
OUT_FEATURES = 10
OUT_PADDED = 128          # lane-dense output slab; real logits are columns [:10]
MAX_TILE_M = 2048         # rows per grid step (multiple of 16 for bf16 sublane packing)


# ----------------------------- Pallas kernel -----------------------------

def _mlp_kernel(x_ref, w1_ref, b1_ref, w2_ref, b2_ref, o_ref):
    """Fused MLP: (tm,784)bf16 @ (784,128)bf16 + b1 -> ReLU -> @ (128,128pad)bf16 + b2."""
    h = jnp.dot(x_ref[...], w1_ref[...], preferred_element_type=jnp.float32)
    h = jnp.maximum(h + b1_ref[...], 0.0)                        # nn.ReLU (f32)
    y = jnp.dot(h.astype(jnp.bfloat16), w2_ref[...],
                preferred_element_type=jnp.float32)
    o_ref[...] = (y + b2_ref[...]).astype(o_ref.dtype)


# ----------------------------- wrapper -----------------------------

def _round_up(a, b):
    return (a + b - 1) // b * b


def mlp_forward(params, x):
    """Equivalent of MLP.forward: x.view(-1, 784) -> Linear -> ReLU -> Linear (logits)."""
    x2 = x.reshape(-1, IN_FEATURES).astype(jnp.bfloat16)        # x.view(-1, 784), bf16 stream
    m = x2.shape[0]

    # Large row tiles (overhead amortization) but always >=2 grid steps on big batches so
    # both v7x TensorCores are used; multiple of 16 for bf16 sublane packing.
    tile_m = min(MAX_TILE_M, max(_round_up(pl.cdiv(m, 2), 16), 16))
    grid = (pl.cdiv(m, tile_m),)

    w1 = params["w1"].astype(jnp.bfloat16)
    b1 = params["b1"].reshape(1, HIDDEN).astype(jnp.float32)
    w2p = params["w2_padded"].astype(jnp.bfloat16)               # (128, 128), cols 10: are zero
    b2p = params["b2_padded"].reshape(1, OUT_PADDED).astype(jnp.float32)

    flops = 2 * m * (IN_FEATURES * HIDDEN + HIDDEN * OUT_PADDED)
    bytes_accessed = (m * IN_FEATURES * 2                        # x (bf16)
                      + IN_FEATURES * HIDDEN * 2                 # w1 (bf16)
                      + HIDDEN * 4                               # b1
                      + HIDDEN * OUT_PADDED * 2                  # w2 padded (bf16)
                      + OUT_PADDED * 4                           # b2 padded
                      + m * OUT_PADDED * 4)                      # padded logits out (f32)

    out = pl.pallas_call(
        _mlp_kernel,
        out_shape=jax.ShapeDtypeStruct((m, OUT_PADDED), jnp.float32),
        grid=grid,
        in_specs=[
            pl.BlockSpec((tile_m, IN_FEATURES), lambda i: (i, 0)),   # streamed row tiles
            pl.BlockSpec((IN_FEATURES, HIDDEN), lambda i: (0, 0)),   # resident weights
            pl.BlockSpec((1, HIDDEN), lambda i: (0, 0)),
            pl.BlockSpec((HIDDEN, OUT_PADDED), lambda i: (0, 0)),
            pl.BlockSpec((1, OUT_PADDED), lambda i: (0, 0)),
        ],
        out_specs=pl.BlockSpec((tile_m, OUT_PADDED), lambda i: (i, 0)),
        compiler_params=pltpu.CompilerParams(
            dimension_semantics=("parallel",),                   # shard batch tiles across TCs
            vmem_limit_bytes=32 * 1024 * 1024,
        ),
        cost_estimate=pl.CostEstimate(flops=flops, transcendentals=0,
                                      bytes_accessed=bytes_accessed),
    )(x2, w1, b1, w2p, b2p)

    return out[:, :OUT_FEATURES]                                 # drop lane padding


mlp_forward_jit = jax.jit(mlp_forward)


def mlp_forward_ref(params, x):
    """Pure-JAX f32 reference of the module forward (for correctness check)."""
    x2 = x.reshape(-1, IN_FEATURES).astype(jnp.float32)
    h = jnp.maximum(x2 @ params["w1"] + params["b1"], 0.0)
    return h @ params["w2"] + params["b2"]


# ----------------------------- deterministic params -----------------------------

def init_params(key):
    """nn.Linear-style init: U(-1/sqrt(fan_in), 1/sqrt(fan_in)) for weights and biases."""
    k1, k2, k3, k4 = jax.random.split(key, 4)
    bnd1 = 1.0 / (IN_FEATURES ** 0.5)
    bnd2 = 1.0 / (HIDDEN ** 0.5)
    w1 = jax.random.uniform(k1, (IN_FEATURES, HIDDEN), jnp.float32, -bnd1, bnd1)
    b1 = jax.random.uniform(k2, (HIDDEN,), jnp.float32, -bnd1, bnd1)
    w2 = jax.random.uniform(k3, (HIDDEN, OUT_FEATURES), jnp.float32, -bnd2, bnd2)
    b2 = jax.random.uniform(k4, (OUT_FEATURES,), jnp.float32, -bnd2, bnd2)
    # Pre-padded copies for the lane-dense kernel output (extra columns are exactly zero).
    w2_padded = jnp.pad(w2, ((0, 0), (0, OUT_PADDED - OUT_FEATURES)))
    b2_padded = jnp.pad(b2, (0, OUT_PADDED - OUT_FEATURES))
    return {"w1": w1, "b1": b1, "w2": w2, "b2": b2,
            "w2_padded": w2_padded, "b2_padded": b2_padded}


# ----------------------------- main -----------------------------
# TODO(synk): model_training / evaluate / predict are host-side training & metric loops
#             (optimizer, f1_score, argmax over softmax) and are not part of the kernel.

if __name__ == "__main__":
    key = jax.random.PRNGKey(0)
    pkey, xkey1, xkey2 = jax.random.split(key, 3)

    params = init_params(pkey)

    # Small MNIST-like batch.
    x = jax.random.normal(xkey1, (2, 1, 28, 28), jnp.float32)
    out = jax.block_until_ready(mlp_forward_jit(params, x))
    assert out.shape == (2, OUT_FEATURES), out.shape
    ref = mlp_forward_ref(params, x)
    assert bool(jnp.all(jnp.isfinite(out)))
    # bf16-streamed inputs with f32 accumulation: compare to f32 reference at bf16 tolerance.
    assert bool(jnp.allclose(out, ref, atol=2e-2, rtol=2e-2)), float(jnp.max(jnp.abs(out - ref)))

    # Batch size not a multiple of the tile: exercises the cdiv grid / boundary-block path.
    x2 = jax.random.normal(xkey2, (37, 1, 28, 28), jnp.float32)
    out2 = jax.block_until_ready(mlp_forward_jit(params, x2))
    assert out2.shape == (37, OUT_FEATURES), out2.shape
    ref2 = mlp_forward_ref(params, x2)
    assert bool(jnp.all(jnp.isfinite(out2)))
    assert bool(jnp.allclose(out2, ref2, atol=2e-2, rtol=2e-2))

    print("KERNEL_OK")
</pallas_src>

<mosaic_0001>
module attributes {stable_mosaic.version = 11 : i64} {
  func.func @_mlp_kernel(%arg0: i32, %arg1: memref<16x784xbf16, #tpu.memory_space<vmem>>, %arg2: memref<784x128xbf16, #tpu.memory_space<vmem>>, %arg3: memref<1x128xf32, #tpu.memory_space<vmem>>, %arg4: memref<128x128xbf16, #tpu.memory_space<vmem>>, %arg5: memref<1x128xf32, #tpu.memory_space<vmem>>, %arg6: memref<16x128xf32, #tpu.memory_space<vmem>>) attributes {dimension_semantics = [#tpu.dimension_semantics<parallel>], iteration_bounds = array<i64: 1>, scalar_prefetch = 0 : i64, scratch_operands = 0 : i64, tpu.core_type = #tpu.core_type<tc>, window_params = [{transform_indices = @transform_0, window_bounds = array<i64: 16, 784>}, {pipeline_mode = #tpu.pipeline_mode<synchronous>, transform_indices = @transform_1, window_bounds = array<i64: 784, 128>}, {pipeline_mode = #tpu.pipeline_mode<synchronous>, transform_indices = @transform_2, window_bounds = array<i64: 1, 128>}, {pipeline_mode = #tpu.pipeline_mode<synchronous>, transform_indices = @transform_3, window_bounds = array<i64: 128, 128>}, {pipeline_mode = #tpu.pipeline_mode<synchronous>, transform_indices = @transform_4, window_bounds = array<i64: 1, 128>}, {transform_indices = @transform_5, window_bounds = array<i64: 16, 128>}]} {
    %c0 = arith.constant 0 : index
    %c0_0 = arith.constant 0 : index
    %0 = vector.load %arg1[%c0, %c0_0] : memref<16x784xbf16, #tpu.memory_space<vmem>>, vector<16x784xbf16>
    %c0_1 = arith.constant 0 : index
    %c0_2 = arith.constant 0 : index
    %1 = vector.load %arg2[%c0_1, %c0_2] : memref<784x128xbf16, #tpu.memory_space<vmem>>, vector<784x128xbf16>
    %cst = arith.constant dense<0.000000e+00> : vector<16x128xf32>
    %2 = tpu.matmul %0, %1, %cst {dimension_numbers = #tpu.dot_dimension_numbers<[1], [0], [0], [1], [0, 0, 1, 1], [], []>} : vector<16x784xbf16>, vector<784x128xbf16>, vector<16x128xf32> -> vector<16x128xf32>
    %c0_3 = arith.constant 0 : index
    %c0_4 = arith.constant 0 : index
    %3 = vector.load %arg3[%c0_3, %c0_4] : memref<1x128xf32, #tpu.memory_space<vmem>>, vector<1x128xf32>
    %4 = vector.broadcast %3 : vector<1x128xf32> to vector<16x128xf32>
    %5 = arith.addf %2, %4 : vector<16x128xf32>
    %cst_5 = arith.constant 0.000000e+00 : f32
    %6 = vector.broadcast %cst_5 : f32 to vector<16x128xf32>
    %7 = arith.maximumf %5, %6 : vector<16x128xf32>
    %8 = arith.truncf %7 : vector<16x128xf32> to vector<16x128xbf16>
    %c0_6 = arith.constant 0 : index
    %c0_7 = arith.constant 0 : index
    %9 = vector.load %arg4[%c0_6, %c0_7] : memref<128x128xbf16, #tpu.memory_space<vmem>>, vector<128x128xbf16>
    %cst_8 = arith.constant dense<0.000000e+00> : vector<16x128xf32>
    %10 = tpu.matmul %8, %9, %cst_8 {dimension_numbers = #tpu.dot_dimension_numbers<[1], [0], [0], [1], [0, 0, 1, 1], [], []>} : vector<16x128xbf16>, vector<128x128xbf16>, vector<16x128xf32> -> vector<16x128xf32>
    %c0_9 = arith.constant 0 : index
    %c0_10 = arith.constant 0 : index
    %11 = vector.load %arg5[%c0_9, %c0_10] : memref<1x128xf32, #tpu.memory_space<vmem>>, vector<1x128xf32>
    %12 = vector.broadcast %11 : vector<1x128xf32> to vector<16x128xf32>
    %13 = arith.addf %10, %12 : vector<16x128xf32>
    %c0_11 = arith.constant 0 : index
    %c0_12 = arith.constant 0 : index
    %14 = vector.load %arg6[%c0_11, %c0_12] : memref<16x128xf32, #tpu.memory_space<vmem>>, vector<16x128xf32>
    tpu.vector_store %arg6[%c0_11, %c0_12], %13 {strides = array<i32>} : memref<16x128xf32, #tpu.memory_space<vmem>>, vector<16x128xf32>,
    return
  }
  func.func @transform_0(%arg0: i32) -> (i32, i32) {
    %c0_i32 = arith.constant 0 : i32
    %c0_i32_0 = arith.constant 0 : i32
    return %arg0, %c0_i32 : i32, i32
  }
  func.func @transform_1(%arg0: i32) -> (i32, i32) {
    %c0_i32 = arith.constant 0 : i32
    %c0_i32_0 = arith.constant 0 : i32
    %c0_i32_1 = arith.constant 0 : i32
    return %c0_i32, %c0_i32_0 : i32, i32
  }
  func.func @transform_2(%arg0: i32) -> (i32, i32) {
    %c0_i32 = arith.constant 0 : i32
    %c0_i32_0 = arith.constant 0 : i32
    %c0_i32_1 = arith.constant 0 : i32
    return %c0_i32, %c0_i32_0 : i32, i32
  }
  func.func @transform_3(%arg0: i32) -> (i32, i32) {
    %c0_i32 = arith.constant 0 : i32
    %c0_i32_0 = arith.constant 0 : i32
    %c0_i32_1 = arith.constant 0 : i32
    return %c0_i32, %c0_i32_0 : i32, i32
  }
  func.func @transform_4(%arg0: i32) -> (i32, i32) {
    %c0_i32 = arith.constant 0 : i32
    %c0_i32_0 = arith.constant 0 : i32
    %c0_i32_1 = arith.constant 0 : i32
    return %c0_i32, %c0_i32_0 : i32, i32
  }
  func.func @transform_5(%arg0: i32) -> (i32, i32) {
    %c0_i32 = arith.constant 0 : i32
    %c0_i32_0 = arith.constant 0 : i32
    return %arg0, %c0_i32 : i32, i32
  }
}

</mosaic_0001>

<llo_original>
// kernel: mlp_forward.1
$region0: #{mlp_forward.1}
  #allocation0 [shape = 'u32[]', space=smem, size = 0x4, offset = 0x4, fixed_abs, tag = 'smem constant byte address 0x4 - core index']
  #allocation1 [shape = 'u32[72,128]{1,0:T(1,128)}', space=vmem, size = 0x9000, scoped, tag = 'internal scratch']
  %s0 = inlined_call_operand.vmem [shape: bf16[2,784], index: 0, kind: input, shape index: {}]
  %s1 = inlined_call_operand.vmem [shape: bf16[784,128], index: 1, kind: input, shape index: {}]
  %s2 = inlined_call_operand.vmem [shape: f32[1,128], index: 2, kind: input, shape index: {}]
  %s3 = inlined_call_operand.vmem [shape: bf16[128,128], index: 3, kind: input, shape index: {}]
  %s4 = inlined_call_operand.vmem [shape: f32[1,128], index: 4, kind: input, shape index: {}]
  %s5 = inlined_call_operand.hbm [shape: f32[2,128], index: 5, kind: output, shape index: {}]
  %s6 = sld [smem:[#allocation0]]
  $region30: #{mlp_forward.1} parent=0
    _
  %s8 = ssub.s32 1, %s6
  %s9 = scalar_select 0, %s8, %s6
  $region1: #{mlp_forward.1} parent=0
    #allocation2 [shape = 'u8[8192]{0}', space=vmem, size = 0x2000, scoped, tag = 'output window, operand 0, single buffered']
    #allocation3 [shape = 's32[1]{0}', space=sflag, size = 0x4, scoped, tag = 'scoped memory for mlp_forward.1']
    %10 = vsyncpa [#allocation3], 0
    // Predicated region
    $region2: #{mlp_forward.1} parent=1 // pred_check
      _
    $region3: #{mlp_forward.1} parent=1 // pred_check_branch
      %12 = sbr.rel (0) target = $region5
    $region4: #{mlp_forward.1} parent=1 // pred_region
      _
    $region5: #{mlp_forward.1} parent=1 // pred_fallthru
      _
    // Predicated region
    $region6: #{mlp_forward.1} parent=1 // pred_check
      _
    $region7: #{mlp_forward.1} parent=1 // pred_check_branch
      %14 = sbr.rel (0) target = $region9
    $region8: #{mlp_forward.1} parent=1 // pred_region
      _
    $region9: #{mlp_forward.1} parent=1 // pred_fallthru
      _
    // Predicated region
    $region10: #{mlp_forward.1} parent=1 // pred_check
      _
    $region11: #{mlp_forward.1} parent=1 // pred_check_branch
      %16 = sbr.rel (0) target = $region13
    $region12: #{mlp_forward.1} parent=1 // pred_region
      _
    $region13: #{mlp_forward.1} parent=1 // pred_fallthru
      _
    // Predicated region
    $region14: #{mlp_forward.1} parent=1 // pred_check
      _
    $region15: #{mlp_forward.1} parent=1 // pred_check_branch
      %18 = sbr.rel (0) target = $region17
    $region16: #{mlp_forward.1} parent=1 // pred_region
      _
    $region17: #{mlp_forward.1} parent=1 // pred_fallthru
      _
    // Predicated region
    $region18: #{mlp_forward.1} parent=1 // pred_check
      _
    $region19: #{mlp_forward.1} parent=1 // pred_check_branch
      %20 = sbr.rel (0) target = $region21
    $region20: #{mlp_forward.1} parent=1 // pred_region
      _
    $region21: #{mlp_forward.1} parent=1 // pred_fallthru
      _
    %v22 = vld [vmem:[%s0] sm:$0x7f]
    %v23 = vld [vmem:[%s0 + $0x7] sm:$0x7f]
    %v24 = vld [vmem:[%s0 + $0xe] sm:$0x7f]
    %v25 = vld [vmem:[%s0 + $0x15] sm:$0x7f]
    %v26 = vld [vmem:[%s0 + $0x1c] sm:$0x7f]
    %v27 = vld [vmem:[%s0 + $0x23] sm:$0x7f]
    %v28 = vld [vmem:[%s0 + $0x2a] sm:$0x7f]
    %v29 = vld [vmem:[%s0 + $0x31] sm:$0x7f]
    %v30 = vld [vmem:[%s1] sm:$0xf]
    %v31 = vld [vmem:[%s1 + $0x4] sm:$0xf]
    %v32 = vld [vmem:[%s1 + $0x8] sm:$0xf]
    %v33 = vld [vmem:[%s1 + $0xc] sm:$0xf]
    %v34 = vld [vmem:[%s1 + $0x10] sm:$0xf]
    %v35 = vld [vmem:[%s1 + $0x14] sm:$0xf]
    %v36 = vld [vmem:[%s1 + $0x18] sm:$0xf]
    %v37 = vld [vmem:[%s1 + $0x1c] sm:$0xf]
    %v38 = vld [vmem:[%s1 + $0x20] sm:$0xf]
    %v39 = vld [vmem:[%s1 + $0x24] sm:$0xf]
    %v40 = vld [vmem:[%s1 + $0x28] sm:$0xf]
    %v41 = vld [vmem:[%s1 + $0x2c] sm:$0xf]
    %v42 = vld [vmem:[%s1 + $0x30] sm:$0xf]
    %v43 = vld [vmem:[%s1 + $0x34] sm:$0xf]
    %v44 = vld [vmem:[%s1 + $0x38] sm:$0xf]
    %v45 = vld [vmem:[%s1 + $0x3c] sm:$0xf]
    %v46 = vld [vmem:[%s1 + $0x40] sm:$0xf]
    %v47 = vld [vmem:[%s1 + $0x44] sm:$0xf]
    %v48 = vld [vmem:[%s1 + $0x48] sm:$0xf]
    %v49 = vld [vmem:[%s1 + $0x4c] sm:$0xf]
    %v50 = vld [vmem:[%s1 + $0x50] sm:$0xf]
    %v51 = vld [vmem:[%s1 + $0x54] sm:$0xf]
    %v52 = vld [vmem:[%s1 + $0x58] sm:$0xf]
    %v53 = vld [vmem:[%s1 + $0x5c] sm:$0xf]
    %v54 = vld [vmem:[%s1 + $0x60] sm:$0xf]
    %v55 = vld [vmem:[%s1 + $0x64] sm:$0xf]
    %v56 = vld [vmem:[%s1 + $0x68] sm:$0xf]
    %v57 = vld [vmem:[%s1 + $0x6c] sm:$0xf]
    %v58 = vld [vmem:[%s1 + $0x70] sm:$0xf]
    %v59 = vld [vmem:[%s1 + $0x74] sm:$0xf]
    %v60 = vld [vmem:[%s1 + $0x78] sm:$0xf]
    %v61 = vld [vmem:[%s1 + $0x7c] sm:$0xf]
    %v62 = vld [vmem:[%s1 + $0x80] sm:$0xf]
    %v63 = vld [vmem:[%s1 + $0x84] sm:$0xf]
    %v64 = vld [vmem:[%s1 + $0x88] sm:$0xf]
    %v65 = vld [vmem:[%s1 + $0x8c] sm:$0xf]
    %v66 = vld [vmem:[%s1 + $0x90] sm:$0xf]
    %v67 = vld [vmem:[%s1 + $0x94] sm:$0xf]
    %v68 = vld [vmem:[%s1 + $0x98] sm:$0xf]
    %v69 = vld [vmem:[%s1 + $0x9c] sm:$0xf]
    %v70 = vld [vmem:[%s1 + $0xa0] sm:$0xf]
    %v71 = vld [vmem:[%s1 + $0xa4] sm:$0xf]
    %v72 = vld [vmem:[%s1 + $0xa8] sm:$0xf]
    %v73 = vld [vmem:[%s1 + $0xac] sm:$0xf]
    %v74 = vld [vmem:[%s1 + $0xb0] sm:$0xf]
    %v75 = vld [vmem:[%s1 + $0xb4] sm:$0xf]
    %v76 = vld [vmem:[%s1 + $0xb8] sm:$0xf]
    %v77 = vld [vmem:[%s1 + $0xbc] sm:$0xf]
    %v78 = vld [vmem:[%s1 + $0xc0] sm:$0xf]
    %v79 = vld [vmem:[%s1 + $0xc4] sm:$0xf]
    %v80 = vld [vmem:[%s1 + $0xc8] sm:$0xf]
    %v81 = vld [vmem:[%s1 + $0xcc] sm:$0xf]
    %v82 = vld [vmem:[%s1 + $0xd0] sm:$0xf]
    %v83 = vld [vmem:[%s1 + $0xd4] sm:$0xf]
    %v84 = vld [vmem:[%s1 + $0xd8] sm:$0xf]
    %v85 = vld [vmem:[%s1 + $0xdc] sm:$0xf]
    %v86 = vld [vmem:[%s1 + $0xe0] sm:$0xf]
    %v87 = vld [vmem:[%s1 + $0xe4] sm:$0xf]
    %v88 = vld [vmem:[%s1 + $0xe8] sm:$0xf]
    %v89 = vld [vmem:[%s1 + $0xec] sm:$0xf]
    %v90 = vld [vmem:[%s1 + $0xf0] sm:$0xf]
    %v91 = vld [vmem:[%s1 + $0xf4] sm:$0xf]
    %v92 = vld [vmem:[%s1 + $0xf8] sm:$0xf]
    %v93 = vld [vmem:[%s1 + $0xfc] sm:$0xf]
    %v94 = vld [vmem:[%s1 + $0x100] sm:$0xf]
    %v95 = vld [vmem:[%s1 + $0x104] sm:$0xf]
    %v96 = vld [vmem:[%s1 + $0x108] sm:$0xf]
    %v97 = vld [vmem:[%s1 + $0x10c] sm:$0xf]
    %v98 = vld [vmem:[%s1 + $0x110] sm:$0xf]
    %v99 = vld [vmem:[%s1 + $0x114] sm:$0xf]
    %v100 = vld [vmem:[%s1 + $0x118] sm:$0xf]
    %v101 = vld [vmem:[%s1 + $0x11c] sm:$0xf]
    %v102 = vld [vmem:[%s1 + $0x120] sm:$0xf]
    %v103 = vld [vmem:[%s1 + $0x124] sm:$0xf]
    %v104 = vld [vmem:[%s1 + $0x128] sm:$0xf]
    %v105 = vld [vmem:[%s1 + $0x12c] sm:$0xf]
    %v106 = vld [vmem:[%s1 + $0x130] sm:$0xf]
    %v107 = vld [vmem:[%s1 + $0x134] sm:$0xf]
    %v108 = vld [vmem:[%s1 + $0x138] sm:$0xf]
    %v109 = vld [vmem:[%s1 + $0x13c] sm:$0xf]
    %v110 = vld [vmem:[%s1 + $0x140] sm:$0xf]
    %v111 = vld [vmem:[%s1 + $0x144] sm:$0xf]
    %v112 = vld [vmem:[%s1 + $0x148] sm:$0xf]
    %v113 = vld [vmem:[%s1 + $0x14c] sm:$0xf]
    %v114 = vld [vmem:[%s1 + $0x150] sm:$0xf]
    %v115 = vld [vmem:[%s1 + $0x154] sm:$0xf]
    %v116 = vld [vmem:[%s1 + $0x158] sm:$0xf]
    %v117 = vld [vmem:[%s1 + $0x15c] sm:$0xf]
    %v118 = vld [vmem:[%s1 + $0x160] sm:$0xf]
    %v119 = vld [vmem:[%s1 + $0x164] sm:$0xf]
    %v120 = vld [vmem:[%s1 + $0x168] sm:$0xf]
    %v121 = vld [vmem:[%s1 + $0x16c] sm:$0xf]
    %v122 = vld [vmem:[%s1 + $0x170] sm:$0xf]
    %v123 = vld [vmem:[%s1 + $0x174] sm:$0xf]
    %v124 = vld [vmem:[%s1 + $0x178] sm:$0xf]
    %v125 = vld [vmem:[%s1 + $0x17c] sm:$0xf]
    %v126 = vld [vmem:[%s1 + $0x180] sm:$0xf]
    %v127 = vld [vmem:[%s1 + $0x184] sm:$0xf]
    %v128 = vld [vmem:[%s2] sm:$0x1]
    %v130 = vperm.slane %v128, 0
    %133 = vst [vmem:[#allocation1] ss:$9 sm:$0xff] %v22
    %s135 = scalar_lea.vmem [#allocation1], 1
    %136 = vst [vmem:[%s135] ss:$9 sm:$0xff] %v23
    %s138 = scalar_lea.vmem [#allocation1], 2
    %139 = vst [vmem:[%s138] ss:$9 sm:$0xff] %v24
    %s141 = scalar_lea.vmem [#allocation1], 3
    %142 = vst [vmem:[%s141] ss:$9 sm:$0xff] %v25
    %s144 = scalar_lea.vmem [#allocation1], 4
    %145 = vst [vmem:[%s144] ss:$9 sm:$0xff] %v26
    %s147 = scalar_lea.vmem [#allocation1], 5
    %148 = vst [vmem:[%s147] ss:$9 sm:$0xff] %v27
    %s150 = scalar_lea.vmem [#allocation1], 6
    %151 = vst [vmem:[%s150] ss:$9 sm:$0xff] %v28
    %s153 = scalar_lea.vmem [#allocation1], 7
    %154 = vst [vmem:[%s153] ss:$9 sm:$0xff] %v29
    %v155 = vld [vmem:[#allocation1] sm:$0xff]
    %v156 = vld [vmem:[#allocation1 + $0x9] sm:$0xff]
    %v157 = vld [vmem:[#allocation1 + $0x12] sm:$0xff]
    %v158 = vld [vmem:[#allocation1 + $0x1b] sm:$0xff]
    %v159 = vld [vmem:[#allocation1 + $0x24] sm:$0xff]
    %v160 = vld [vmem:[#allocation1 + $0x2d] sm:$0xff]
    %v161 = vld [vmem:[#allocation1 + $0x36] sm:$0xff]
    %v266 = vunpack.c.l.b16 %v30
    %v267 = vunpack.c.l.b16 %v31
    %v268 = vunpack.c.l.b16 %v32
    %v269 = vunpack.c.l.b16 %v33
    %v270 = vunpack.c.l.b16 %v34
    %v271 = vunpack.c.l.b16 %v35
    %v272 = vunpack.c.l.b16 %v36
    %v273 = vunpack.c.l.b16 %v37
    %v274 = vunpack.c.l.b16 %v38
    %v275 = vunpack.c.l.b16 %v39
    %v276 = vunpack.c.l.b16 %v40
    %v277 = vunpack.c.l.b16 %v41
    %v278 = vunpack.c.l.b16 %v42
    %v279 = vunpack.c.l.b16 %v43
    %v280 = vunpack.c.l.b16 %v44
    %v281 = vunpack.c.l.b16 %v45
    %v282 = vunpack.c.l.b16 %v46
    %v283 = vunpack.c.l.b16 %v47
    %v284 = vunpack.c.l.b16 %v48
    %v285 = vunpack.c.l.b16 %v49
    %v286 = vunpack.c.l.b16 %v50
    %v287 = vunpack.c.l.b16 %v51
    %v288 = vunpack.c.l.b16 %v52
    %v289 = vunpack.c.l.b16 %v53
    %v290 = vunpack.c.l.b16 %v54
    %v291 = vunpack.c.l.b16 %v55
    %v292 = vunpack.c.l.b16 %v56
    %v293 = vunpack.c.l.b16 %v57
    %v294 = vunpack.c.l.b16 %v58
    %v295 = vunpack.c.l.b16 %v59
    %v296 = vunpack.c.l.b16 %v60
    %v297 = vunpack.c.l.b16 %v61
    %v298 = vunpack.c.l.b16 %v62
    %v299 = vunpack.c.l.b16 %v63
    %v300 = vunpack.c.l.b16 %v64
    %v301 = vunpack.c.l.b16 %v65
    %v302 = vunpack.c.l.b16 %v66
    %v303 = vunpack.c.l.b16 %v67
    %v304 = vunpack.c.l.b16 %v68
    %v305 = vunpack.c.l.b16 %v69
    %v306 = vunpack.c.l.b16 %v70
    %v307 = vunpack.c.l.b16 %v71
    %v308 = vunpack.c.l.b16 %v72
    %v309 = vunpack.c.l.b16 %v73
    %v310 = vunpack.c.l.b16 %v74
    %v311 = vunpack.c.l.b16 %v75
    %v312 = vunpack.c.l.b16 %v76
    %v313 = vunpack.c.l.b16 %v77
    %v314 = vunpack.c.l.b16 %v78
    %v315 = vunpack.c.l.b16 %v79
    %v316 = vunpack.c.l.b16 %v80
    %v317 = vunpack.c.l.b16 %v81
    %v318 = vunpack.c.l.b16 %v82
    %v319 = vunpack.c.l.b16 %v83
    %v320 = vunpack.c.l.b16 %v84
    %v321 = vunpack.c.l.b16 %v85
    %v322 = vunpack.c.l.b16 %v86
    %v323 = vunpack.c.l.b16 %v87
    %v324 = vunpack.c.l.b16 %v88
    %v325 = vunpack.c.l.b16 %v89
    %v326 = vunpack.c.l.b16 %v90
    %v327 = vunpack.c.l.b16 %v91
    %v328 = vunpack.c.l.b16 %v92
    %v329 = vunpack.c.l.b16 %v93
    %v330 = vunpack.c.l.b16 %v94
    %v331 = vunpack.c.l.b16 %v95
    %v332 = vunpack.c.l.b16 %v96
    %v333 = vunpack.c.l.b16 %v97
    %v334 = vunpack.c.l.b16 %v98
    %v335 = vunpack.c.l.b16 %v99
    %v336 = vunpack.c.l.b16 %v100
    %v337 = vunpack.c.l.b16 %v101
    %v338 = vunpack.c.l.b16 %v102
    %v339 = vunpack.c.l.b16 %v103
    %v340 = vunpack.c.l.b16 %v104
    %v341 = vunpack.c.l.b16 %v105
    %v342 = vunpack.c.l.b16 %v106
    %v343 = vunpack.c.l.b16 %v107
    %v344 = vunpack.c.l.b16 %v108
    %v345 = vunpack.c.l.b16 %v109
    %v346 = vunpack.c.l.b16 %v110
    %v347 = vunpack.c.l.b16 %v111
    %v348 = vunpack.c.l.b16 %v112
    %v349 = vunpack.c.l.b16 %v113
    %v350 = vunpack.c.l.b16 %v114
    %v351 = vunpack.c.l.b16 %v115
    %v352 = vunpack.c.l.b16 %v116
    %v353 = vunpack.c.l.b16 %v117
    %v354 = vunpack.c.l.b16 %v118
    %v355 = vunpack.c.l.b16 %v119
    %v356 = vunpack.c.l.b16 %v120
    %v357 = vunpack.c.l.b16 %v121
    %v358 = vunpack.c.l.b16 %v122
    %v359 = vunpack.c.l.b16 %v123
    %v360 = vunpack.c.l.b16 %v124
    %v361 = vunpack.c.l.b16 %v125
    %v362 = vunpack.c.l.b16 %v126
    %v363 = vunpack.c.l.b16 %v127
    %v364 = vpack.c.b16 %v267, %v266
    %v365 = vpack.c.b16 %v269, %v268
    %v366 = vpack.c.b16 %v271, %v270
    %v367 = vpack.c.b16 %v273, %v272
    %v368 = vpack.c.b16 %v275, %v274
    %v369 = vpack.c.b16 %v277, %v276
    %v370 = vpack.c.b16 %v279, %v278
    %v371 = vpack.c.b16 %v281, %v280
    %v372 = vpack.c.b16 %v283, %v282
    %v373 = vpack.c.b16 %v285, %v284
    %v374 = vpack.c.b16 %v287, %v286
    %v375 = vpack.c.b16 %v289, %v288
    %v376 = vpack.c.b16 %v291, %v290
    %v377 = vpack.c.b16 %v293, %v292
    %v378 = vpack.c.b16 %v295, %v294
    %v379 = vpack.c.b16 %v297, %v296
    %v380 = vpack.c.b16 %v299, %v298
    %v381 = vpack.c.b16 %v301, %v300
    %v382 = vpack.c.b16 %v303, %v302
    %v383 = vpack.c.b16 %v305, %v304
    %v384 = vpack.c.b16 %v307, %v306
    %v385 = vpack.c.b16 %v309, %v308
    %v386 = vpack.c.b16 %v311, %v310
    %v387 = vpack.c.b16 %v313, %v312
    %v388 = vpack.c.b16 %v315, %v314
    %v389 = vpack.c.b16 %v317, %v316
    %v390 = vpack.c.b16 %v319, %v318
    %v391 = vpack.c.b16 %v321, %v320
    %v392 = vpack.c.b16 %v323, %v322
    %v393 = vpack.c.b16 %v325, %v324
    %v394 = vpack.c.b16 %v327, %v326
    %v395 = vpack.c.b16 %v329, %v328
    %v396 = vpack.c.b16 %v331, %v330
    %v397 = vpack.c.b16 %v333, %v332
    %v398 = vpack.c.b16 %v335, %v334
    %v399 = vpack.c.b16 %v337, %v336
    %v400 = vpack.c.b16 %v339, %v338
    %v401 = vpack.c.b16 %v341, %v340
    %v402 = vpack.c.b16 %v343, %v342
    %v403 = vpack.c.b16 %v345, %v344
    %v404 = vpack.c.b16 %v347, %v346
    %v405 = vpack.c.b16 %v349, %v348
    %v406 = vpack.c.b16 %v351, %v350
    %v407 = vpack.c.b16 %v353, %v352
    %v408 = vpack.c.b16 %v355, %v354
    %v409 = vpack.c.b16 %v357, %v356
    %v410 = vpack.c.b16 %v359, %v358
    %v411 = vpack.c.b16 %v361, %v360
    %v412 = vpack.c.b16 %v363, %v362
    %vm462 = vcmask 130048
    %v463 = vsel %vm462, %v161, 0
    %465 = vmatpush.bf16.msra.mxu0 %v371
    %466 = vmatpush.bf16.msra.mxu0 %v370
    %467 = vmatpush.bf16.msra.mxu0 %v369
    %468 = vmatpush.bf16.msra.mxu0 %v368
    %469 = vmatpush.bf16.msra.mxu0 %v367
    %470 = vmatpush.bf16.msra.mxu0 %v366
    %471 = vmatpush.bf16.msra.mxu0 %v365
    %472 = vmatpush.bf16.msra.mxu0 %v364
    %473 = vmatmul.bf16.gmra.mxu0 %v155
    %v474 = vpop.f32.mrf.mxu0
    %v475 = vadd.f32 %v130, %v474
    %v476 = vpop.f32.mrf.mxu0
    %v477 = vadd.f32 %v130, %v476
    %478 = vdwg.mxu0
    %479 = vmatpush.bf16.msra.mxu0 %v379
    %480 = vmatpush.bf16.msra.mxu0 %v378
    %481 = vmatpush.bf16.msra.mxu0 %v377
    %482 = vmatpush.bf16.msra.mxu0 %v376
    %483 = vmatpush.bf16.msra.mxu0 %v375
    %484 = vmatpush.bf16.msra.mxu0 %v374
    %485 = vmatpush.bf16.msra.mxu0 %v373
    %486 = vmatpush.bf16.msra.mxu0 %v372
    %487 = vmatmul.bf16.gmra.mxu0 %v156
    %v488 = vpop.f32.mrf.mxu0
    %v489 = vadd.f32 %v475, %v488
    %v490 = vpop.f32.mrf.mxu0
    %v491 = vadd.f32 %v477, %v490
    %492 = vdwg.mxu0
    %493 = vmatpush.bf16.msra.mxu0 %v387
    %494 = vmatpush.bf16.msra.mxu0 %v386
    %495 = vmatpush.bf16.msra.mxu0 %v385
    %496 = vmatpush.bf16.msra.mxu0 %v384
    %497 = vmatpush.bf16.msra.mxu0 %v383
    %498 = vmatpush.bf16.msra.mxu0 %v382
    %499 = vmatpush.bf16.msra.mxu0 %v381
    %500 = vmatpush.bf16.msra.mxu0 %v380
    %501 = vmatmul.bf16.gmra.mxu0 %v157
    %v502 = vpop.f32.mrf.mxu0
    %v503 = vadd.f32 %v489, %v502
    %v504 = vpop.f32.mrf.mxu0
    %v505 = vadd.f32 %v491, %v504
    %506 = vdwg.mxu0
    %507 = vmatpush.bf16.msra.mxu0 %v395
    %508 = vmatpush.bf16.msra.mxu0 %v394
    %509 = vmatpush.bf16.msra.mxu0 %v393
    %510 = vmatpush.bf16.msra.mxu0 %v392
    %511 = vmatpush.bf16.msra.mxu0 %v391
    %512 = vmatpush.bf16.msra.mxu0 %v390
    %513 = vmatpush.bf16.msra.mxu0 %v389
    %514 = vmatpush.bf16.msra.mxu0 %v388
    %515 = vmatmul.bf16.gmra.mxu0 %v158
    %v516 = vpop.f32.mrf.mxu0
    %v517 = vadd.f32 %v503, %v516
    %v518 = vpop.f32.mrf.mxu0
    %v519 = vadd.f32 %v505, %v518
    %520 = vdwg.mxu0
    %521 = vmatpush.bf16.msra.mxu0 %v403
    %522 = vmatpush.bf16.msra.mxu0 %v402
    %523 = vmatpush.bf16.msra.mxu0 %v401
    %524 = vmatpush.bf16.msra.mxu0 %v400
    %525 = vmatpush.bf16.msra.mxu0 %v399
    %526 = vmatpush.bf16.msra.mxu0 %v398
    %527 = vmatpush.bf16.msra.mxu0 %v397
    %528 = vmatpush.bf16.msra.mxu0 %v396
    %529 = vmatmul.bf16.gmra.mxu0 %v159
    %v530 = vpop.f32.mrf.mxu0
    %v531 = vadd.f32 %v517, %v530
    %v532 = vpop.f32.mrf.mxu0
    %v533 = vadd.f32 %v519, %v532
    %534 = vdwg.mxu0
    %535 = vmatpush.bf16.msra.mxu0 %v411
    %536 = vmatpush.bf16.msra.mxu0 %v410
    %537 = vmatpush.bf16.msra.mxu0 %v409
    %538 = vmatpush.bf16.msra.mxu0 %v408
    %539 = vmatpush.bf16.msra.mxu0 %v407
    %540 = vmatpush.bf16.msra.mxu0 %v406
    %541 = vmatpush.bf16.msra.mxu0 %v405
    %542 = vmatpush.bf16.msra.mxu0 %v404
    %543 = vmatmul.bf16.gmra.mxu0 %v160
    %v544 = vpop.f32.mrf.mxu0
    %v545 = vadd.f32 %v531, %v544
    %v546 = vpop.f32.mrf.mxu0
    %v547 = vadd.f32 %v533, %v546
    %548 = vdwg.mxu0
    %549 = vmatpush.bf16.msra.mxu0 0
    %550 = vmatpush.bf16.msra.mxu0 0
    %551 = vmatpush.bf16.msra.mxu0 0
    %552 = vmatpush.bf16.msra.mxu0 0
    %553 = vmatpush.bf16.msra.mxu0 0
    %554 = vmatpush.bf16.msra.mxu0 0
    %555 = vmatpush.bf16.msra.mxu0 0
    %556 = vmatpush.bf16.msra.mxu0 %v412
    %557 = vmatmul.bf16.gmra.mxu0 %v463
    %v558 = vpop.f32.mrf.mxu0
    %v559 = vadd.f32 %v545, %v558
    %v560 = vpop.f32.mrf.mxu0
    %v561 = vadd.f32 %v547, %v560
    %562 = vdwg.mxu0
    %v563 = vmax.f32 %v559, 0.0
    %v564 = vmax.f32 %v561, 0.0
    %v565 = vpack.c.bf16 %v564, %v563
    %v566 = vld [vmem:[%s3] sm:$0xf]
    %v567 = vld [vmem:[%s3 + $0x4] sm:$0xf]
    %v568 = vld [vmem:[%s3 + $0x8] sm:$0xf]
    %v569 = vld [vmem:[%s3 + $0xc] sm:$0xf]
    %v570 = vld [vmem:[%s3 + $0x10] sm:$0xf]
    %v571 = vld [vmem:[%s3 + $0x14] sm:$0xf]
    %v572 = vld [vmem:[%s3 + $0x18] sm:$0xf]
    %v573 = vld [vmem:[%s3 + $0x1c] sm:$0xf]
    %v574 = vld [vmem:[%s3 + $0x20] sm:$0xf]
    %v575 = vld [vmem:[%s3 + $0x24] sm:$0xf]
    %v576 = vld [vmem:[%s3 + $0x28] sm:$0xf]
    %v577 = vld [vmem:[%s3 + $0x2c] sm:$0xf]
    %v578 = vld [vmem:[%s3 + $0x30] sm:$0xf]
    %v579 = vld [vmem:[%s3 + $0x34] sm:$0xf]
    %v580 = vld [vmem:[%s3 + $0x38] sm:$0xf]
    %v581 = vld [vmem:[%s3 + $0x3c] sm:$0xf]
    %v582 = vld [vmem:[%s4] sm:$0x1]
    %v584 = vperm.slane %v582, 0
    %v602 = vunpack.c.l.b16 %v566
    %v603 = vunpack.c.l.b16 %v567
    %v604 = vunpack.c.l.b16 %v568
    %v605 = vunpack.c.l.b16 %v569
    %v606 = vunpack.c.l.b16 %v570
    %v607 = vunpack.c.l.b16 %v571
    %v608 = vunpack.c.l.b16 %v572
    %v609 = vunpack.c.l.b16 %v573
    %v610 = vunpack.c.l.b16 %v574
    %v611 = vunpack.c.l.b16 %v575
    %v612 = vunpack.c.l.b16 %v576
    %v613 = vunpack.c.l.b16 %v577
    %v614 = vunpack.c.l.b16 %v578
    %v615 = vunpack.c.l.b16 %v579
    %v616 = vunpack.c.l.b16 %v580
    %v617 = vunpack.c.l.b16 %v581
    %v618 = vpack.c.b16 %v603, %v602
    %v619 = vpack.c.b16 %v605, %v604
    %v620 = vpack.c.b16 %v607, %v606
    %v621 = vpack.c.b16 %v609, %v608
    %v622 = vpack.c.b16 %v611, %v610
    %v623 = vpack.c.b16 %v613, %v612
    %v624 = vpack.c.b16 %v615, %v614
    %v625 = vpack.c.b16 %v617, %v616
    %634 = vmatpush.bf16.msra.mxu0 %v625
    %635 = vmatpush.bf16.msra.mxu0 %v624
    %636 = vmatpush.bf16.msra.mxu0 %v623
    %637 = vmatpush.bf16.msra.mxu0 %v622
    %638 = vmatpush.bf16.msra.mxu0 %v621
    %639 = vmatpush.bf16.msra.mxu0 %v620
    %640 = vmatpush.bf16.msra.mxu0 %v619
    %641 = vmatpush.bf16.msra.mxu0 %v618
    %642 = vmatmul.bf16.gmra.mxu0 %v565
    %v643 = vpop.f32.mrf.mxu0
    %v644 = vadd.f32 %v584, %v643
    %v645 = vpop.f32.mrf.mxu0
    %v646 = vadd.f32 %v584, %v645
    %647 = vdwg.mxu0
    %648 = vst [vmem:[#allocation2] sm:$0xff] %v644
    %649 = vst [vmem:[#allocation2 + $0x8] sm:$0xff] %v646
    // Predicated region
    $region22: #{mlp_forward.1} parent=1 // pred_check
      _
    $region23: #{mlp_forward.1} parent=1 // pred_check_branch
      %651 = sbr.rel (0) target = $region25
    $region24: #{mlp_forward.1} parent=1 // pred_region
      %653 = vsyncadd [#allocation3], 224
      %s654 = sshll.u32 [#allocation2], 4
      %s655 = int_to_ptr.vmem [resolvable:$true] %s654
      %s656 = sshll.u32 %s5, 4
      %s657 = int_to_ptr.hbm [resolvable:$true] %s656
      %662 = dma.vmem_to_hbm [thread:$0]  %s655, 32, %s657, [#allocation3], 32, 32, 2
    $region25: #{mlp_forward.1} parent=1 // pred_fallthru
      _
    // Predicated region
    $region26: #{mlp_forward.1} parent=1 // pred_check
      _
    $region27: #{mlp_forward.1} parent=1 // pred_check_branch
      %664 = sbr.rel (0) target = $region29
    $region28: #{mlp_forward.1} parent=1 // pred_region
      %666 = dma.done [#allocation3], 256
    $region29: #{mlp_forward.1} parent=1 // pred_fallthru
      _
    %667 = vsyncpa [#allocation3], 1

</llo_original>
